<compile_context>
chip_gen: v7x
topology: tpu7x:2x2x1
jax: 0.10.0
libtpu: 0.0.40
codegen_flags: <defaults>
</compile_context>

<pallas_src>
import jax
import jax.numpy as jnp
from jax.experimental import pallas as pl
from jax.experimental.pallas import tpu as pltpu


def _round_up(n: int, m: int) -> int:
    return ((n + m - 1) // m) * m


def _largest_tile_divisor(padded_dim: int, cap: int) -> int:
    """Largest multiple of 128 that divides `padded_dim` (itself a multiple of
    128) and is <= cap.  Keeps tiles lane-dense while avoiding extra padding."""
    best = 128
    d = 128
    while d <= min(padded_dim, cap):
        if padded_dim % d == 0:
            best = d
        d += 128
    return best


def _split_tn(tn: int, np_: int) -> int:
    """Halve the N tile (to a multiple-of-128 divisor of Np) so there are >= 2
    parallel output blocks for v7x's second TensorCore."""
    half = tn // 2
    if half >= 128 and half % 128 == 0 and np_ % half == 0:
        return half
    return 128  # 128 always divides the padded N


# --------------------------------------------------------------------------
# Kernels
# --------------------------------------------------------------------------
def _matmul_bias_kernel(x_ref, w_ref, b_ref, o_ref, acc_ref):
    """Tiled path: one (tm, tn) output tile; K is the innermost grid axis.
    Bias is folded into the accumulator init (k == 0)."""
    k = pl.program_id(2)

    @pl.when(k == 0)
    def _():
        acc_ref[...] = jnp.broadcast_to(
            b_ref[...].astype(jnp.float32), acc_ref.shape)

    acc_ref[...] += jnp.dot(
        x_ref[...], w_ref[...], preferred_element_type=jnp.float32)

    @pl.when(k == pl.num_programs(2) - 1)
    def _():
        o_ref[...] = acc_ref[...].astype(o_ref.dtype)


def _small_matmul_bias_kernel(x_ref, w_ref, b_ref, o_ref):
    """Small-M fast path: full K resident, single dense output tile per grid
    step along N; no scratch, no pl.when."""
    acc = jnp.dot(x_ref[...], w_ref[...], preferred_element_type=jnp.float32)
    o_ref[...] = (acc + b_ref[...].astype(jnp.float32)).astype(o_ref.dtype)


# --------------------------------------------------------------------------
# Wrapper
# --------------------------------------------------------------------------
def pallas_linear(x, w_pad, b_pad, *, n_out, tk, tn, out_dtype):
    """y = x[:, :K] @ W + b via a Pallas TPU GEMM.

    x:      [M, K]   (any float dtype; cast to W's dtype here, before the DMA)
    w_pad:  [Kp, Np] pre-padded, pre-cast weight (Kp, Np multiples of 128)
    b_pad:  [1, Np]  pre-padded f32 bias
    tk, tn: pre-chosen multiple-of-128 tiles dividing Kp / Np
    """
    M, K = x.shape
    Kp, Np = w_pad.shape
    assert Kp % tk == 0 and Np % tn == 0 and b_pad.shape == (1, Np)

    # Row tile: fill the MXU when M is large, otherwise one sublane-dense block.
    tm = min(512, _round_up(M, 16))
    Mp = _round_up(M, tm)
    grid_m, grid_n, grid_k = Mp // tm, Np // tn, Kp // tk

    # v7x has 2 TensorCores and shards the "parallel" grid axes across them:
    # make sure (grid_m * grid_n) >= 2 whenever the problem can be split.
    if grid_m * grid_n < 2:
        if Np >= 256:
            tn = _split_tn(tn, Np)
            grid_n = Np // tn
        elif Mp >= 32:
            tm = _round_up((Mp + 1) // 2, 16)
            Mp = _round_up(M, tm)
            grid_m = Mp // tm

    # Cast the activation to the weight dtype (bf16 under autocast) BEFORE the
    # kernel so the x DMA moves half the bytes, then zero-pad M/K.  Padded K
    # contributes 0 to the accumulation; padded rows/cols are sliced off below.
    x = x.astype(w_pad.dtype)
    if (Mp, Kp) != (M, K):
        x = jnp.pad(x, ((0, Mp - M), (0, Kp - K)))

    out_itemsize = jnp.dtype(out_dtype).itemsize
    cost = pl.CostEstimate(
        flops=2 * M * K * n_out,
        transcendentals=0,
        bytes_accessed=(Mp * Kp * x.dtype.itemsize
                        + Kp * Np * w_pad.dtype.itemsize
                        + Mp * Np * out_itemsize
                        + Np * 4),
    )

    if M <= 128 and grid_k == 1:
        # ---- small-M fast path: single K block, no accumulator machinery ----
        out = pl.pallas_call(
            _small_matmul_bias_kernel,
            out_shape=jax.ShapeDtypeStruct((Mp, Np), out_dtype),
            grid_spec=pltpu.PrefetchScalarGridSpec(
                num_scalar_prefetch=0,
                grid=(grid_n,),
                in_specs=[
                    pl.BlockSpec((Mp, Kp), lambda j: (0, 0)),
                    pl.BlockSpec((Kp, tn), lambda j: (0, j)),
                    pl.BlockSpec((1, tn), lambda j: (0, j)),
                ],
                out_specs=pl.BlockSpec((Mp, tn), lambda j: (0, j)),
            ),
            compiler_params=pltpu.CompilerParams(
                dimension_semantics=("parallel",),
                vmem_limit_bytes=32 * 1024 * 1024,
            ),
            cost_estimate=cost,
        )(x, w_pad, b_pad)
    else:
        # ---- tiled path: 3-D grid (M, N, K) with resident f32 accumulator ----
        out = pl.pallas_call(
            _matmul_bias_kernel,
            out_shape=jax.ShapeDtypeStruct((Mp, Np), out_dtype),
            grid_spec=pltpu.PrefetchScalarGridSpec(
                num_scalar_prefetch=0,
                grid=(grid_m, grid_n, grid_k),
                in_specs=[
                    pl.BlockSpec((tm, tk), lambda i, j, k: (i, k)),
                    pl.BlockSpec((tk, tn), lambda i, j, k: (k, j)),
                    pl.BlockSpec((1, tn), lambda i, j, k: (0, j)),
                ],
                out_specs=pl.BlockSpec((tm, tn), lambda i, j, k: (i, j)),
                scratch_shapes=[pltpu.VMEM((tm, tn), jnp.float32)],
            ),
            compiler_params=pltpu.CompilerParams(
                dimension_semantics=("parallel", "parallel", "arbitrary"),
                vmem_limit_bytes=32 * 1024 * 1024,
            ),
            cost_estimate=cost,
        )(x, w_pad, b_pad)

    if (Mp, Np) != (M, n_out):
        out = out[:M, :n_out]
    return out


# --------------------------------------------------------------------------
# Model
# --------------------------------------------------------------------------
class PallasModel:
    """JAX mirror of the commune `Model` forward() wrapper."""

    def __init__(self, in_features=32, out_features=32, seed=0):
        kw, kb = jax.random.split(jax.random.PRNGKey(seed))
        # Deterministic synthetic parameters (nn.Linear-like, stored
        # pre-transposed [in, out] so features land on the 128-lane axis).
        self.in_features = in_features
        self.out_features = out_features
        self.weight = (
            jax.random.normal(kw, (in_features, out_features), jnp.float32) * 0.02
        )
        self.bias = jax.random.normal(kb, (1, out_features), jnp.float32) * 0.02

        # K / N tiling is fixed by the layer shape: choose it once, pad the
        # weight/bias once, and cache the bf16 (autocast) weight copy once.
        kp = _round_up(in_features, 128)
        np_ = _round_up(out_features, 128)
        self.tk = _largest_tile_divisor(kp, 1024)
        self.tn = _largest_tile_divisor(np_, 512)
        w_pad = jnp.pad(self.weight,
                        ((0, kp - in_features), (0, np_ - out_features)))
        self.w_pad_f32 = w_pad
        self.w_pad_bf16 = w_pad.astype(jnp.bfloat16)
        self.b_pad = jnp.pad(self.bias, ((0, 0), (0, np_ - out_features)))  # f32

    def _forward(self, x, train=False, autocast=True):
        # TODO(synk): base-class `_forward` raises NotImplementedError; this
        #             linear projection is the stand-in concrete _forward.
        if autocast:
            w = self.w_pad_bf16           # cached, no per-call convert / pad
            out_dtype = jnp.bfloat16      # torch.cuda.amp.autocast analogue
        else:
            w = self.w_pad_f32
            out_dtype = x.dtype           # autocast off -> stay in input dtype
        return pallas_linear(x, w, self.b_pad,
                             n_out=self.out_features,
                             tk=self.tk, tn=self.tn,
                             out_dtype=out_dtype)

    def forward(self, **kwargs):
        # Mirrors Model.forward control flow exactly.
        no_grad = kwargs.pop("no_grad", True)
        autocast = kwargs.pop("autocast", True)
        kwargs.pop("empty_cache", True)           # torch.cuda.empty_cache -> no-op
        train = kwargs["train"] = kwargs.get("train", False)
        if train:
            no_grad = False                       # (train/eval toggles are no-ops here)
        else:
            no_grad = True
        result = self._forward(autocast=autocast, **kwargs)
        if no_grad:
            result = jax.lax.stop_gradient(result)
        return result


if __name__ == "__main__":
    # ---- demo shapes from the module's minimal concrete forward ----
    batch, hidden = 2, 32
    x = jax.random.normal(jax.random.PRNGKey(0), (batch, hidden), jnp.float32)
    model = PallasModel(in_features=hidden, out_features=hidden, seed=0)

    # Default path: no_grad + autocast (bf16 output) -> small-M fast kernel.
    out = jax.block_until_ready(model.forward(x=x))
    assert out.shape == (batch, hidden) and out.dtype == jnp.bfloat16
    ref = (
        jnp.dot(
            x.astype(jnp.bfloat16),
            model.weight.astype(jnp.bfloat16),
            preferred_element_type=jnp.float32,
        )
        + model.bias
    ).astype(jnp.bfloat16)
    assert jnp.allclose(
        out.astype(jnp.float32), ref.astype(jnp.float32), atol=1e-2, rtol=1e-2
    )

    # autocast=False path: stays f32 end-to-end.
    out_f32 = jax.block_until_ready(model.forward(x=x, autocast=False))
    assert out_f32.shape == (batch, hidden) and out_f32.dtype == jnp.float32
    ref_f32 = jnp.dot(x, model.weight) + model.bias
    assert jnp.allclose(out_f32, ref_f32, atol=1e-4, rtol=1e-4)

    # Exercise the tiled 3-D-grid path (K accumulation + v7x N-split) at a
    # modest size: M=160 (> small-M threshold), K=1152 (3 K blocks), N=256.
    model2 = PallasModel(in_features=1152, out_features=256, seed=1)
    x2 = jax.random.normal(jax.random.PRNGKey(2), (160, 1152), jnp.float32)
    out2 = jax.block_until_ready(model2.forward(x=x2, autocast=False))
    assert out2.shape == (160, 256) and out2.dtype == jnp.float32
    ref2 = jnp.dot(x2, model2.weight) + model2.bias
    assert jnp.allclose(out2, ref2, atol=1e-2, rtol=1e-2)

    print("KERNEL_OK")
</pallas_src>

<mosaic_0001>
module attributes {stable_mosaic.version = 11 : i64} {
  func.func @_small_matmul_bias_kernel(%arg0: i32, %arg1: memref<16x128xbf16, #tpu.memory_space<vmem>>, %arg2: memref<128x128xbf16, #tpu.memory_space<vmem>>, %arg3: memref<1x128xf32, #tpu.memory_space<vmem>>, %arg4: memref<16x128xbf16, #tpu.memory_space<vmem>>) attributes {dimension_semantics = [#tpu.dimension_semantics<parallel>], iteration_bounds = array<i64: 1>, scalar_prefetch = 0 : i64, scratch_operands = 0 : i64, tpu.core_type = #tpu.core_type<tc>, window_params = [{pipeline_mode = #tpu.pipeline_mode<synchronous>, transform_indices = @transform_0, window_bounds = array<i64: 16, 128>}, {transform_indices = @transform_1, window_bounds = array<i64: 128, 128>}, {transform_indices = @transform_2, window_bounds = array<i64: 1, 128>}, {transform_indices = @transform_3, window_bounds = array<i64: 16, 128>}]} {
    %c0 = arith.constant 0 : index
    %c0_0 = arith.constant 0 : index
    %0 = vector.load %arg1[%c0, %c0_0] : memref<16x128xbf16, #tpu.memory_space<vmem>>, vector<16x128xbf16>
    %c0_1 = arith.constant 0 : index
    %c0_2 = arith.constant 0 : index
    %1 = vector.load %arg2[%c0_1, %c0_2] : memref<128x128xbf16, #tpu.memory_space<vmem>>, vector<128x128xbf16>
    %cst = arith.constant dense<0.000000e+00> : vector<16x128xf32>
    %2 = tpu.matmul %0, %1, %cst {dimension_numbers = #tpu.dot_dimension_numbers<[1], [0], [0], [1], [0, 0, 1, 1], [], []>} : vector<16x128xbf16>, vector<128x128xbf16>, vector<16x128xf32> -> vector<16x128xf32>
    %c0_3 = arith.constant 0 : index
    %c0_4 = arith.constant 0 : index
    %3 = vector.load %arg3[%c0_3, %c0_4] : memref<1x128xf32, #tpu.memory_space<vmem>>, vector<1x128xf32>
    %4 = vector.broadcast %3 : vector<1x128xf32> to vector<16x128xf32>
    %5 = arith.addf %2, %4 : vector<16x128xf32>
    %6 = arith.truncf %5 : vector<16x128xf32> to vector<16x128xbf16>
    %c0_5 = arith.constant 0 : index
    %c0_6 = arith.constant 0 : index
    %7 = vector.load %arg4[%c0_5, %c0_6] : memref<16x128xbf16, #tpu.memory_space<vmem>>, vector<16x128xbf16>
    tpu.vector_store %arg4[%c0_5, %c0_6], %6 {strides = array<i32>} : memref<16x128xbf16, #tpu.memory_space<vmem>>, vector<16x128xbf16>,
    return
  }
  func.func @transform_0(%arg0: i32) -> (i32, i32) {
    %c0_i32 = arith.constant 0 : i32
    %c0_i32_0 = arith.constant 0 : i32
    %c0_i32_1 = arith.constant 0 : i32
    return %c0_i32, %c0_i32_0 : i32, i32
  }
  func.func @transform_1(%arg0: i32) -> (i32, i32) {
    %c0_i32 = arith.constant 0 : i32
    %c0_i32_0 = arith.constant 0 : i32
    return %c0_i32, %arg0 : i32, i32
  }
  func.func @transform_2(%arg0: i32) -> (i32, i32) {
    %c0_i32 = arith.constant 0 : i32
    %c0_i32_0 = arith.constant 0 : i32
    return %c0_i32, %arg0 : i32, i32
  }
  func.func @transform_3(%arg0: i32) -> (i32, i32) {
    %c0_i32 = arith.constant 0 : i32
    %c0_i32_0 = arith.constant 0 : i32
    return %c0_i32, %arg0 : i32, i32
  }
}

</mosaic_0001>

<llo_original>
// kernel: tpu_custom_call.1
$region0: #{tpu_custom_call.1}
  #allocation0 [shape = 'u32[]', space=smem, size = 0x4, offset = 0x4, fixed_abs, tag = 'smem constant byte address 0x4 - core index']
  #allocation1 [shape = 'u32[144,128]{1,0:T(1,128)}', space=vmem, size = 0x12000, scoped, tag = 'internal scratch']
  %s0 = inlined_call_operand.hbm [shape: bf16[16,128], index: 0, kind: input, shape index: {}]
  %s1 = inlined_call_operand.hbm [shape: bf16[128,128], index: 1, kind: input, shape index: {}]
  %s2 = inlined_call_operand.vmem [shape: f32[1,128], index: 2, kind: input, shape index: {}]
  %s3 = inlined_call_operand.hbm [shape: bf16[16,128], index: 3, kind: output, shape index: {}]
  %s4 = sld [smem:[#allocation0]]
  $region30: #{tpu_custom_call.1} parent=0
    _
  %s6 = ssub.s32 1, %s4
  %s7 = scalar_select 0, %s6, %s4
  $region1: #{tpu_custom_call.1} parent=0
    #allocation2 [shape = 'u8[4096]{0}', space=vmem, size = 0x1000, scoped, tag = 'input window, operand 0, single buffered']
    #allocation3 [shape = 's32[1]{0}', space=sflag, size = 0x4, scoped, tag = 'scoped memory for tpu_custom_call.1']
    #allocation4 [shape = 's32[1]{0}', space=sflag, size = 0x4, scoped, tag = 'scoped memory for tpu_custom_call.1']
    #allocation5 [shape = 'u8[32768]{0}', space=vmem, size = 0x8000, scoped, tag = 'input window, operand 1, single buffered']
    #allocation6 [shape = 's32[1]{0}', space=sflag, size = 0x4, scoped, tag = 'scoped memory for tpu_custom_call.1']
    #allocation7 [shape = 'u8[4096]{0}', space=vmem, size = 0x1000, scoped, tag = 'output window, operand 0, single buffered']
    %8 = vsyncpa [#allocation3], 0
    %9 = vsyncpa [#allocation6], 0
    %10 = vsyncpa [#allocation4], 0
    // Predicated region
    $region2: #{tpu_custom_call.1} parent=1 // pred_check
      _
    $region3: #{tpu_custom_call.1} parent=1 // pred_check_branch
      %12 = sbr.rel (0) target = $region5
    $region4: #{tpu_custom_call.1} parent=1 // pred_region
      %s14 = ssub.s32 128, 128
      %15 = vsyncadd [#allocation3], %s14
      %s16 = sshll.u32 [#allocation2], 4
      %s17 = int_to_ptr.vmem [resolvable:$true] %s16
      %22 = dma.hbm_to_vmem [thread:$0]  %s0, 128, %s17, [#allocation3], 64, 64, 4
    $region5: #{tpu_custom_call.1} parent=1 // pred_fallthru
      _
    // Predicated region
    $region6: #{tpu_custom_call.1} parent=1 // pred_check
      _
    $region7: #{tpu_custom_call.1} parent=1 // pred_check_branch
      %24 = sbr.rel (0) target = $region9
    $region8: #{tpu_custom_call.1} parent=1 // pred_region
      %s26 = ssub.s32 1024, 1024
      %27 = vsyncadd [#allocation6], %s26
      %s28 = sshll.u32 [#allocation5], 4
      %s29 = int_to_ptr.vmem [resolvable:$true] %s28
      %34 = dma.hbm_to_vmem [thread:$0]  %s1, 1024, %s29, [#allocation6], 64, 64, 4
    $region9: #{tpu_custom_call.1} parent=1 // pred_fallthru
      _
    // Predicated region
    $region10: #{tpu_custom_call.1} parent=1 // pred_check
      _
    $region11: #{tpu_custom_call.1} parent=1 // pred_check_branch
      %36 = sbr.rel (0) target = $region13
    $region12: #{tpu_custom_call.1} parent=1 // pred_region
      _
    $region13: #{tpu_custom_call.1} parent=1 // pred_fallthru
      _
    // Predicated region
    $region14: #{tpu_custom_call.1} parent=1 // pred_check
      _
    $region15: #{tpu_custom_call.1} parent=1 // pred_check_branch
      %38 = sbr.rel (0) target = $region17
    $region16: #{tpu_custom_call.1} parent=1 // pred_region
      %39 = dma.done [#allocation3], 128
    $region17: #{tpu_custom_call.1} parent=1 // pred_fallthru
      _
    // Predicated region
    $region18: #{tpu_custom_call.1} parent=1 // pred_check
      _
    $region19: #{tpu_custom_call.1} parent=1 // pred_check_branch
      %41 = sbr.rel (0) target = $region21
    $region20: #{tpu_custom_call.1} parent=1 // pred_region
      %42 = dma.done [#allocation6], 1024
    $region21: #{tpu_custom_call.1} parent=1 // pred_fallthru
      _
    %v44 = vld [vmem:[#allocation2] sm:$0xf]
    %v45 = vld [vmem:[#allocation2 + $0x4] sm:$0xf]
    %v46 = vld [vmem:[#allocation5] sm:$0xf]
    %v47 = vld [vmem:[#allocation5 + $0x4] sm:$0xf]
    %v48 = vld [vmem:[#allocation5 + $0x8] sm:$0xf]
    %v49 = vld [vmem:[#allocation5 + $0xc] sm:$0xf]
    %v50 = vld [vmem:[#allocation5 + $0x10] sm:$0xf]
    %v51 = vld [vmem:[#allocation5 + $0x14] sm:$0xf]
    %v52 = vld [vmem:[#allocation5 + $0x18] sm:$0xf]
    %v53 = vld [vmem:[#allocation5 + $0x1c] sm:$0xf]
    %v54 = vld [vmem:[#allocation5 + $0x20] sm:$0xf]
    %v55 = vld [vmem:[#allocation5 + $0x24] sm:$0xf]
    %v56 = vld [vmem:[#allocation5 + $0x28] sm:$0xf]
    %v57 = vld [vmem:[#allocation5 + $0x2c] sm:$0xf]
    %v58 = vld [vmem:[#allocation5 + $0x30] sm:$0xf]
    %v59 = vld [vmem:[#allocation5 + $0x34] sm:$0xf]
    %v60 = vld [vmem:[#allocation5 + $0x38] sm:$0xf]
    %v61 = vld [vmem:[#allocation5 + $0x3c] sm:$0xf]
    %v62 = vld [vmem:[%s2] sm:$0x1]
    %v64 = vlaneseq
    %v65 = vshrl.u32 %v64, 7
    %v66 = vsub.s32 0, %v65
    %v67 = vrot.slane %v62, %v66
    %v71 = vunpack.c.l.b16 %v44
    %v72 = vunpack.c.l.b16 %v45
    %v73 = vpack.c.b16 %v72, %v71
    %v91 = vunpack.c.l.b16 %v46
    %v92 = vunpack.c.l.b16 %v47
    %v93 = vunpack.c.l.b16 %v48
    %v94 = vunpack.c.l.b16 %v49
    %v95 = vunpack.c.l.b16 %v50
    %v96 = vunpack.c.l.b16 %v51
    %v97 = vunpack.c.l.b16 %v52
    %v98 = vunpack.c.l.b16 %v53
    %v99 = vunpack.c.l.b16 %v54
    %v100 = vunpack.c.l.b16 %v55
    %v101 = vunpack.c.l.b16 %v56
    %v102 = vunpack.c.l.b16 %v57
    %v103 = vunpack.c.l.b16 %v58
    %v104 = vunpack.c.l.b16 %v59
    %v105 = vunpack.c.l.b16 %v60
    %v106 = vunpack.c.l.b16 %v61
    %v107 = vpack.c.b16 %v92, %v91
    %v108 = vpack.c.b16 %v94, %v93
    %v109 = vpack.c.b16 %v96, %v95
    %v110 = vpack.c.b16 %v98, %v97
    %v111 = vpack.c.b16 %v100, %v99
    %v112 = vpack.c.b16 %v102, %v101
    %v113 = vpack.c.b16 %v104, %v103
    %v114 = vpack.c.b16 %v106, %v105
    %123 = vmatprep.subr.bf16.mxu0 0
    %124 = vmatpush1.bf16.msra.mxu0 %v107
    %125 = vmatprep.subr.bf16.mxu0 0
    %126 = vmatpush1.bf16.msra.mxu0 %v108
    %127 = vmatprep.subr.bf16.mxu0 0
    %128 = vmatpush1.bf16.msra.mxu0 %v109
    %129 = vmatprep.subr.bf16.mxu0 0
    %130 = vmatpush1.bf16.msra.mxu0 %v110
    %131 = vmatprep.subr.bf16.mxu0 0
    %132 = vmatpush1.bf16.msra.mxu0 %v111
    %133 = vmatprep.subr.bf16.mxu0 0
    %134 = vmatpush1.bf16.msra.mxu0 %v112
    %135 = vmatprep.subr.bf16.mxu0 0
    %136 = vmatpush1.bf16.msra.mxu0 %v113
    %137 = vmatprep.subr.bf16.mxu0 0
    %138 = vmatpush1.bf16.msra.mxu0 %v114
    %139 = vmatprep.subr.bf16.mxu0 0
    %140 = vmatpush1.bf16.msra.mxu0 0
    %141 = vmatprep.subr.bf16.mxu0 0
    %142 = vmatpush1.bf16.msra.mxu0 0
    %143 = vmatprep.subr.bf16.mxu0 0
    %144 = vmatpush1.bf16.msra.mxu0 0
    %145 = vmatprep.subr.bf16.mxu0 0
    %146 = vmatpush1.bf16.msra.mxu0 0
    %147 = vmatprep.subr.bf16.mxu0 0
    %148 = vmatpush1.bf16.msra.mxu0 0
    %149 = vmatprep.subr.bf16.mxu0 0
    %150 = vmatpush1.bf16.msra.mxu0 0
    %151 = vmatprep.subr.bf16.mxu0 0
    %152 = vmatpush1.bf16.msra.mxu0 0
    %153 = vmatprep.subr.bf16.mxu0 0
    %154 = vmatpush1.bf16.msra.mxu0 0
    %155 = vmatprep.mubr.bf16.mxu0 0
    %156 = vmatmul.mubr.bf16.gmra.mrb[0].mxu0 %v73
    %v157 = vpop.f32.mrb[0].mxu0
    %v158 = vadd.f32 %v67, %v157
    %v159 = vpop.f32.mrb[0].mxu0
    %v160 = vpop.f32.mrb[0].mxu0
    %v161 = vadd.f32 %v67, %v160
    %v162 = vpop.f32.mrb[0].mxu0
    %163 = vdwg.mxu0
    %v164 = vpack.c.bf16 %v161, %v158
    %v166 = vunpack.c.l.b16 %v164
    %v167 = vunpack.c.h.b16 %v164
    %v168 = vpack.c.b16 %v166, %v166
    %v169 = vpack.c.b16 %v167, %v167
    %172 = vst [vmem:[#allocation7] sm:$0xf] %v168
    %173 = vst [vmem:[#allocation7 + $0x4] sm:$0xf] %v169
    // Predicated region
    $region22: #{tpu_custom_call.1} parent=1 // pred_check
      _
    $region23: #{tpu_custom_call.1} parent=1 // pred_check_branch
      %175 = sbr.rel (0) target = $region25
    $region24: #{tpu_custom_call.1} parent=1 // pred_region
      %s177 = ssub.s32 128, 128
      %178 = vsyncadd [#allocation4], %s177
      %s179 = sshll.u32 [#allocation7], 4
      %s180 = int_to_ptr.vmem [resolvable:$true] %s179
      %185 = dma.vmem_to_hbm [thread:$0]  %s180, 128, %s3, [#allocation4], 64, 64, 4
    $region25: #{tpu_custom_call.1} parent=1 // pred_fallthru
      _
    // Predicated region
    $region26: #{tpu_custom_call.1} parent=1 // pred_check
      _
    $region27: #{tpu_custom_call.1} parent=1 // pred_check_branch
      %187 = sbr.rel (0) target = $region29
    $region28: #{tpu_custom_call.1} parent=1 // pred_region
      %188 = dma.done [#allocation4], 128
    $region29: #{tpu_custom_call.1} parent=1 // pred_fallthru
      _
    %189 = vsyncpa [#allocation3], 1
    %190 = vsyncpa [#allocation6], 1
    %191 = vsyncpa [#allocation4], 1

</llo_original>
